<compile_context>
chip_gen: v6e
topology: v6e:2x2x1
jax: 0.10.0
libtpu: 0.0.40
codegen_flags: <defaults>
</compile_context>

<pallas_src>
import functools

import jax
import jax.numpy as jnp
from jax.experimental import pallas as pl
from jax.experimental.pallas import tpu as pltpu


def _mha_kernel(q_in_ref, kv_in_ref,
                wq_ref, wkv_ref, wo_ref,
                bq_ref, bkv_ref, bo_ref,
                ctx_ref, attn_ref):
    # q_in_ref: (bb, Lq, E)    kv_in_ref: (bb, Lk, E)        (f32 activations)
    # wq_ref:   (E, E) bf16    wkv_ref: (E, 2E) bf16 (Wk|Wv) wo_ref: (E, E) bf16
    # bq_ref:   (1, E) f32     bkv_ref: (1, 2E) f32          bo_ref: (1, E) f32
    # ctx_ref:  (bb, Lq, E_pad)    attn_ref: (bb, Lq, Lk_pad)   (lane-padded outputs)
    bb, lq, e = q_in_ref.shape
    _, lk, _ = kv_in_ref.shape
    e_pad = ctx_ref.shape[-1]
    lk_pad = attn_ref.shape[-1]

    # --- projections (bf16 MXU inputs, f32 accumulate, f32 bias add) ---------------------------
    q_in = q_in_ref[...].reshape(bb * lq, e).astype(jnp.bfloat16)
    kv_in = kv_in_ref[...].reshape(bb * lk, e).astype(jnp.bfloat16)

    # 1/sqrt(E) already folded into wq/bq by the wrapper.
    q = jnp.dot(q_in, wq_ref[...], preferred_element_type=jnp.float32) + bq_ref[...]
    kv = jnp.dot(kv_in, wkv_ref[...], preferred_element_type=jnp.float32) + bkv_ref[...]
    k = kv[:, :e]
    v = kv[:, e:]

    qb = q.astype(jnp.bfloat16).reshape(bb, lq, e)
    kb = k.astype(jnp.bfloat16).reshape(bb, lk, e)
    vb = v.astype(jnp.bfloat16).reshape(bb, lk, e)

    # --- scores: contract on the feature dim (no explicit k transpose) -------------------------
    scores = jnp.einsum("bqd,bkd->bqk", qb, kb,
                        preferred_element_type=jnp.float32)          # (bb, Lq, Lk) f32

    # --- numerically-stable softmax along keys (f32 VPU math, EUP reciprocal) ------------------
    m = jnp.max(scores, axis=-1, keepdims=True)
    ex = jnp.exp(scores - m)
    denom = jnp.sum(ex, axis=-1, keepdims=True)
    weights = ex * pl.reciprocal(denom, approx=True)                 # (bb, Lq, Lk) f32

    # --- context + output projection ------------------------------------------------------------
    ctx = jnp.einsum("bqk,bkd->bqd", weights.astype(jnp.bfloat16), vb,
                     preferred_element_type=jnp.float32)             # (bb, Lq, E) f32
    out = jnp.dot(ctx.reshape(bb * lq, e).astype(jnp.bfloat16), wo_ref[...],
                  preferred_element_type=jnp.float32) + bo_ref[...]
    out = out.reshape(bb, lq, e)

    # --- lane-dense stores (pad last dim to a multiple of 128; wrapper slices it off) ----------
    if e_pad > e:
        out = jnp.concatenate(
            [out, jnp.zeros((bb, lq, e_pad - e), out.dtype)], axis=-1)
    ctx_ref[...] = out.astype(ctx_ref.dtype)

    if lk_pad > lk:
        weights = jnp.concatenate(
            [weights, jnp.zeros((bb, lq, lk_pad - lk), weights.dtype)], axis=-1)
    attn_ref[...] = weights.astype(attn_ref.dtype)


def _round_up(x, m):
    return ((x + m - 1) // m) * m


@functools.partial(jax.jit, static_argnames=("batch_block",))
def general_attention(hidden_state, encoder_outputs, params, *, batch_block=None):
    """hidden_state: (B, Lq, E), encoder_outputs: (B, Lk, E). Returns (context, weights)."""
    B, Lq, E = hidden_state.shape
    _, Lk, _ = encoder_outputs.shape

    # Batch-chunking: fold up to 8 batch rows into one grid step (amortize per-step overhead);
    # for large B the grid still has multiple "parallel" steps (megacore / v7x dual-TC friendly).
    bb = batch_block if batch_block is not None else min(B, 8)
    nb = pl.cdiv(B, bb)

    scale = 1.0 / (float(E) ** 0.5)

    # PyTorch Linear stores W as (out, in); pre-transpose so the kernel does x @ W on the MXU.
    # Fold the 1/sqrt(E) scale into the Q projection; fuse K|V weights; cast weights to bf16.
    wq_t = (params["wq"].T * scale).astype(jnp.bfloat16)                       # (E, E)
    wkv_t = jnp.concatenate([params["wk"].T, params["wv"].T], axis=1).astype(jnp.bfloat16)  # (E, 2E)
    wo_t = params["wo"].T.astype(jnp.bfloat16)                                 # (E, E)
    bq = (params["bq"] * scale).reshape(1, E).astype(jnp.float32)
    bkv = jnp.concatenate([params["bk"], params["bv"]]).reshape(1, 2 * E).astype(jnp.float32)
    bo = params["bo"].reshape(1, E).astype(jnp.float32)

    # Lane-dense output slabs (unmasked vst), sliced back below.
    E_pad = _round_up(E, 128)
    Lk_pad = _round_up(Lk, 128)

    out_shapes = (
        jax.ShapeDtypeStruct((B, Lq, E_pad), jnp.float32),
        jax.ShapeDtypeStruct((B, Lq, Lk_pad), jnp.float32),
    )
    const2d = lambda b: (0, 0)

    ctx_pad, attn_pad = pl.pallas_call(
        _mha_kernel,
        out_shape=out_shapes,
        grid_spec=pltpu.PrefetchScalarGridSpec(
            num_scalar_prefetch=0,
            grid=(nb,),
            in_specs=[
                pl.BlockSpec((bb, Lq, E), lambda b: (b, 0, 0)),    # hidden_state
                pl.BlockSpec((bb, Lk, E), lambda b: (b, 0, 0)),    # encoder_outputs
                pl.BlockSpec((E, E), const2d),                     # wq (scaled, bf16)
                pl.BlockSpec((E, 2 * E), const2d),                 # wk|wv fused (bf16)
                pl.BlockSpec((E, E), const2d),                     # wo (bf16)
                pl.BlockSpec((1, E), const2d),                     # bq (scaled, f32)
                pl.BlockSpec((1, 2 * E), const2d),                 # bk|bv fused (f32)
                pl.BlockSpec((1, E), const2d),                     # bo (f32)
            ],
            out_specs=[
                pl.BlockSpec((bb, Lq, E_pad), lambda b: (b, 0, 0)),
                pl.BlockSpec((bb, Lq, Lk_pad), lambda b: (b, 0, 0)),
            ],
        ),
        compiler_params=pltpu.CompilerParams(
            dimension_semantics=("parallel",),
            vmem_limit_bytes=48 * 1024 * 1024,   # explicit, with headroom for v7x (64 MiB physical)
        ),
    )(hidden_state, encoder_outputs, wq_t, wkv_t, wo_t, bq, bkv, bo)

    ctx = ctx_pad[:, :, :E] if E_pad != E else ctx_pad
    attn = attn_pad[:, :, :Lk] if Lk_pad != Lk else attn_pad
    return ctx, attn


def _init_params(key, hidden_size):
    """Deterministic init mirroring nn.MultiheadAttention parameter shapes."""
    E = hidden_size
    k_inproj, k_bias, k_out, k_outb = jax.random.split(key, 4)
    # in_proj_weight: (3E, E) (xavier-uniform-ish), in_proj_bias: (3E,) zeros in torch
    limit = (6.0 / (3 * E + E)) ** 0.5
    in_proj_w = jax.random.uniform(k_inproj, (3 * E, E), jnp.float32, -limit, limit)
    in_proj_b = jnp.zeros((3 * E,), jnp.float32)
    # out_proj: Linear(E, E)
    limit_o = (1.0 / E) ** 0.5
    out_w = jax.random.uniform(k_out, (E, E), jnp.float32, -limit_o, limit_o)
    out_b = jnp.zeros((E,), jnp.float32)
    return {
        "wq": in_proj_w[0 * E:1 * E], "bq": in_proj_b[0 * E:1 * E],
        "wk": in_proj_w[1 * E:2 * E], "bk": in_proj_b[1 * E:2 * E],
        "wv": in_proj_w[2 * E:3 * E], "bv": in_proj_b[2 * E:3 * E],
        "wo": out_w, "bo": out_b,
    }


def _reference(hidden_state, encoder_outputs, params):
    """Pure-JAX f32 reference (PyTorch MultiheadAttention, num_heads=1, eval)."""
    E = hidden_state.shape[-1]
    q = hidden_state @ params["wq"].T + params["bq"]
    k = encoder_outputs @ params["wk"].T + params["bk"]
    v = encoder_outputs @ params["wv"].T + params["bv"]
    scores = jnp.einsum("bqe,bke->bqk", q, k) / jnp.sqrt(jnp.float32(E))
    w = jax.nn.softmax(scores, axis=-1)
    ctx = jnp.einsum("bqk,bke->bqe", w, v)
    out = ctx @ params["wo"].T + params["bo"]
    return out, w


if __name__ == "__main__":
    B, Lq, Lk, E = 2, 8, 16, 32
    key = jax.random.PRNGKey(0)
    k_h, k_e, k_p = jax.random.split(key, 3)
    hidden_state = jax.random.normal(k_h, (B, Lq, E), jnp.float32)
    encoder_outputs = jax.random.normal(k_e, (B, Lk, E), jnp.float32)
    params = _init_params(k_p, E)

    ctx, attn_w = general_attention(hidden_state, encoder_outputs, params)
    ctx = jax.block_until_ready(ctx)
    attn_w = jax.block_until_ready(attn_w)

    ref_ctx, ref_w = _reference(hidden_state, encoder_outputs, params)
    assert ctx.shape == (B, Lq, E) and attn_w.shape == (B, Lq, Lk)
    # Tolerances loosened vs. the pure-f32 path: MXU operands are bf16 (f32 accumulate) and the
    # softmax denominator uses the EUP approximate reciprocal.
    assert jnp.allclose(ctx, ref_ctx, atol=3e-2, rtol=3e-2)
    assert jnp.allclose(attn_w, ref_w, atol=1e-2, rtol=1e-2)

    print("KERNEL_OK")
</pallas_src>

<mosaic_0001>
module attributes {stable_mosaic.version = 11 : i64} {
  func.func @_mha_kernel(%arg0: i32, %arg1: memref<2x8x32xf32, #tpu.memory_space<vmem>>, %arg2: memref<2x16x32xf32, #tpu.memory_space<vmem>>, %arg3: memref<32x32xbf16, #tpu.memory_space<vmem>>, %arg4: memref<32x64xbf16, #tpu.memory_space<vmem>>, %arg5: memref<32x32xbf16, #tpu.memory_space<vmem>>, %arg6: memref<1x32xf32, #tpu.memory_space<vmem>>, %arg7: memref<1x64xf32, #tpu.memory_space<vmem>>, %arg8: memref<1x32xf32, #tpu.memory_space<vmem>>, %arg9: memref<2x8x128xf32, #tpu.memory_space<vmem>>, %arg10: memref<2x8x128xf32, #tpu.memory_space<vmem>>) attributes {dimension_semantics = [#tpu.dimension_semantics<parallel>], iteration_bounds = array<i64: 1>, scalar_prefetch = 0 : i64, scratch_operands = 0 : i64, tpu.core_type = #tpu.core_type<tc>, window_params = [{transform_indices = @transform_0, window_bounds = array<i64: 2, 8, 32>}, {transform_indices = @transform_1, window_bounds = array<i64: 2, 16, 32>}, {pipeline_mode = #tpu.pipeline_mode<synchronous>, transform_indices = @transform_2, window_bounds = array<i64: 32, 32>}, {pipeline_mode = #tpu.pipeline_mode<synchronous>, transform_indices = @transform_3, window_bounds = array<i64: 32, 64>}, {pipeline_mode = #tpu.pipeline_mode<synchronous>, transform_indices = @transform_4, window_bounds = array<i64: 32, 32>}, {pipeline_mode = #tpu.pipeline_mode<synchronous>, transform_indices = @transform_5, window_bounds = array<i64: 1, 32>}, {pipeline_mode = #tpu.pipeline_mode<synchronous>, transform_indices = @transform_6, window_bounds = array<i64: 1, 64>}, {pipeline_mode = #tpu.pipeline_mode<synchronous>, transform_indices = @transform_7, window_bounds = array<i64: 1, 32>}, {transform_indices = @transform_8, window_bounds = array<i64: 2, 8, 128>}, {transform_indices = @transform_9, window_bounds = array<i64: 2, 8, 128>}]} {
    %c0 = arith.constant 0 : index
    %c0_0 = arith.constant 0 : index
    %c0_1 = arith.constant 0 : index
    %0 = vector.load %arg1[%c0, %c0_0, %c0_1] : memref<2x8x32xf32, #tpu.memory_space<vmem>>, vector<2x8x32xf32>
    %1 = vector.shape_cast %0 : vector<2x8x32xf32> to vector<16x32xf32>
    %2 = arith.truncf %1 : vector<16x32xf32> to vector<16x32xbf16>
    %c0_2 = arith.constant 0 : index
    %c0_3 = arith.constant 0 : index
    %c0_4 = arith.constant 0 : index
    %3 = vector.load %arg2[%c0_2, %c0_3, %c0_4] : memref<2x16x32xf32, #tpu.memory_space<vmem>>, vector<2x16x32xf32>
    %4 = vector.shape_cast %3 : vector<2x16x32xf32> to vector<32x32xf32>
    %5 = arith.truncf %4 : vector<32x32xf32> to vector<32x32xbf16>
    %c0_5 = arith.constant 0 : index
    %c0_6 = arith.constant 0 : index
    %6 = vector.load %arg3[%c0_5, %c0_6] : memref<32x32xbf16, #tpu.memory_space<vmem>>, vector<32x32xbf16>
    %cst = arith.constant dense<0.000000e+00> : vector<16x32xf32>
    %7 = tpu.matmul %2, %6, %cst {dimension_numbers = #tpu.dot_dimension_numbers<[1], [0], [0], [1], [0, 0, 1, 1], [], []>} : vector<16x32xbf16>, vector<32x32xbf16>, vector<16x32xf32> -> vector<16x32xf32>
    %c0_7 = arith.constant 0 : index
    %c0_8 = arith.constant 0 : index
    %8 = vector.load %arg6[%c0_7, %c0_8] : memref<1x32xf32, #tpu.memory_space<vmem>>, vector<1x32xf32>
    %9 = vector.broadcast %8 : vector<1x32xf32> to vector<16x32xf32>
    %10 = arith.addf %7, %9 : vector<16x32xf32>
    %c0_9 = arith.constant 0 : index
    %c0_10 = arith.constant 0 : index
    %11 = vector.load %arg4[%c0_9, %c0_10] : memref<32x64xbf16, #tpu.memory_space<vmem>>, vector<32x64xbf16>
    %cst_11 = arith.constant dense<0.000000e+00> : vector<32x64xf32>
    %12 = tpu.matmul %5, %11, %cst_11 {dimension_numbers = #tpu.dot_dimension_numbers<[1], [0], [0], [1], [0, 0, 1, 1], [], []>} : vector<32x32xbf16>, vector<32x64xbf16>, vector<32x64xf32> -> vector<32x64xf32>
    %c0_12 = arith.constant 0 : index
    %c0_13 = arith.constant 0 : index
    %13 = vector.load %arg7[%c0_12, %c0_13] : memref<1x64xf32, #tpu.memory_space<vmem>>, vector<1x64xf32>
    %14 = vector.broadcast %13 : vector<1x64xf32> to vector<32x64xf32>
    %15 = arith.addf %12, %14 : vector<32x64xf32>
    %16 = vector.extract_strided_slice %15 {offsets = [0, 0], sizes = [32, 32], strides = [1, 1]} : vector<32x64xf32> to vector<32x32xf32>
    %17 = vector.extract_strided_slice %15 {offsets = [0, 32], sizes = [32, 32], strides = [1, 1]} : vector<32x64xf32> to vector<32x32xf32>
    %18 = arith.truncf %10 : vector<16x32xf32> to vector<16x32xbf16>
    %19 = vector.shape_cast %18 : vector<16x32xbf16> to vector<2x8x32xbf16>
    %20 = arith.truncf %16 : vector<32x32xf32> to vector<32x32xbf16>
    %21 = vector.shape_cast %20 : vector<32x32xbf16> to vector<2x16x32xbf16>
    %22 = arith.truncf %17 : vector<32x32xf32> to vector<32x32xbf16>
    %23 = vector.shape_cast %22 : vector<32x32xbf16> to vector<2x16x32xbf16>
    "tpu.trace_start"() <{level = 10 : i32, message = "bqd,bkd->bqk"}> : () -> ()
    %cst_14 = arith.constant dense<0.000000e+00> : vector<2x8x16xf32>
    %24 = tpu.matmul %19, %21, %cst_14 {dimension_numbers = #tpu.dot_dimension_numbers<[2], [2], [1], [1], [0, 0, 0, 1, 1, 1], [0], [0]>} : vector<2x8x32xbf16>, vector<2x16x32xbf16>, vector<2x8x16xf32> -> vector<2x8x16xf32>
    "tpu.trace_stop"() : () -> ()
    %cst_15 = arith.constant dense<0xFF800000> : vector<2x8xf32>
    %25 = vector.multi_reduction <maximumf>, %24, %cst_15 [2] : vector<2x8x16xf32> to vector<2x8xf32>
    %26 = vector.shape_cast %25 : vector<2x8xf32> to vector<2x8x1xf32>
    %27 = vector.broadcast %26 : vector<2x8x1xf32> to vector<2x8x16xf32>
    %28 = arith.subf %24, %27 : vector<2x8x16xf32>
    %29 = math.exp %28 : vector<2x8x16xf32>
    %cst_16 = arith.constant dense<0.000000e+00> : vector<2x8xf32>
    %30 = vector.multi_reduction <add>, %29, %cst_16 [2] : vector<2x8x16xf32> to vector<2x8xf32>
    %31 = vector.shape_cast %30 : vector<2x8xf32> to vector<2x8x1xf32>
    %32 = tpu.reciprocal %31 {approx = true} : vector<2x8x1xf32> -> vector<2x8x1xf32>
    %33 = vector.broadcast %32 : vector<2x8x1xf32> to vector<2x8x16xf32>
    %34 = arith.mulf %29, %33 : vector<2x8x16xf32>
    %35 = arith.truncf %34 : vector<2x8x16xf32> to vector<2x8x16xbf16>
    "tpu.trace_start"() <{level = 10 : i32, message = "bqk,bkd->bqd"}> : () -> ()
    %cst_17 = arith.constant dense<0.000000e+00> : vector<2x8x32xf32>
    %36 = tpu.matmul %35, %23, %cst_17 {dimension_numbers = #tpu.dot_dimension_numbers<[2], [1], [1], [2], [0, 0, 0, 1, 1, 2], [0], [0]>} : vector<2x8x16xbf16>, vector<2x16x32xbf16>, vector<2x8x32xf32> -> vector<2x8x32xf32>
    "tpu.trace_stop"() : () -> ()
    %37 = vector.shape_cast %36 : vector<2x8x32xf32> to vector<16x32xf32>
    %38 = arith.truncf %37 : vector<16x32xf32> to vector<16x32xbf16>
    %c0_18 = arith.constant 0 : index
    %c0_19 = arith.constant 0 : index
    %39 = vector.load %arg5[%c0_18, %c0_19] : memref<32x32xbf16, #tpu.memory_space<vmem>>, vector<32x32xbf16>
    %cst_20 = arith.constant dense<0.000000e+00> : vector<16x32xf32>
    %40 = tpu.matmul %38, %39, %cst_20 {dimension_numbers = #tpu.dot_dimension_numbers<[1], [0], [0], [1], [0, 0, 1, 1], [], []>} : vector<16x32xbf16>, vector<32x32xbf16>, vector<16x32xf32> -> vector<16x32xf32>
    %c0_21 = arith.constant 0 : index
    %c0_22 = arith.constant 0 : index
    %41 = vector.load %arg8[%c0_21, %c0_22] : memref<1x32xf32, #tpu.memory_space<vmem>>, vector<1x32xf32>
    %42 = vector.broadcast %41 : vector<1x32xf32> to vector<16x32xf32>
    %43 = arith.addf %40, %42 : vector<16x32xf32>
    %44 = vector.shape_cast %43 : vector<16x32xf32> to vector<2x8x32xf32>
    %cst_23 = arith.constant 0.000000e+00 : f32
    %45 = vector.broadcast %cst_23 : f32 to vector<2x8x96xf32>
    %46 = tpu.concatenate %44, %45 in 2 : vector<2x8x32xf32>, vector<2x8x96xf32> -> vector<2x8x128xf32>
    %c0_24 = arith.constant 0 : index
    %c0_25 = arith.constant 0 : index
    %c0_26 = arith.constant 0 : index
    %47 = vector.load %arg9[%c0_24, %c0_25, %c0_26] : memref<2x8x128xf32, #tpu.memory_space<vmem>>, vector<2x8x128xf32>
    tpu.vector_store %arg9[%c0_24, %c0_25, %c0_26], %46 {strides = array<i32>} : memref<2x8x128xf32, #tpu.memory_space<vmem>>, vector<2x8x128xf32>,
    %cst_27 = arith.constant 0.000000e+00 : f32
    %48 = vector.broadcast %cst_27 : f32 to vector<2x8x112xf32>
    %49 = tpu.concatenate %34, %48 in 2 : vector<2x8x16xf32>, vector<2x8x112xf32> -> vector<2x8x128xf32>
    %c0_28 = arith.constant 0 : index
    %c0_29 = arith.constant 0 : index
    %c0_30 = arith.constant 0 : index
    %50 = vector.load %arg10[%c0_28, %c0_29, %c0_30] : memref<2x8x128xf32, #tpu.memory_space<vmem>>, vector<2x8x128xf32>
    tpu.vector_store %arg10[%c0_28, %c0_29, %c0_30], %49 {strides = array<i32>} : memref<2x8x128xf32, #tpu.memory_space<vmem>>, vector<2x8x128xf32>,
    return
  }
  func.func @transform_0(%arg0: i32) -> (i32, i32, i32) {
    %c0_i32 = arith.constant 0 : i32
    %c0_i32_0 = arith.constant 0 : i32
    %c0_i32_1 = arith.constant 0 : i32
    return %arg0, %c0_i32, %c0_i32_0 : i32, i32, i32
  }
  func.func @transform_1(%arg0: i32) -> (i32, i32, i32) {
    %c0_i32 = arith.constant 0 : i32
    %c0_i32_0 = arith.constant 0 : i32
    %c0_i32_1 = arith.constant 0 : i32
    return %arg0, %c0_i32, %c0_i32_0 : i32, i32, i32
  }
  func.func @transform_2(%arg0: i32) -> (i32, i32) {
    %c0_i32 = arith.constant 0 : i32
    %c0_i32_0 = arith.constant 0 : i32
    %c0_i32_1 = arith.constant 0 : i32
    return %c0_i32, %c0_i32_0 : i32, i32
  }
  func.func @transform_3(%arg0: i32) -> (i32, i32) {
    %c0_i32 = arith.constant 0 : i32
    %c0_i32_0 = arith.constant 0 : i32
    %c0_i32_1 = arith.constant 0 : i32
    return %c0_i32, %c0_i32_0 : i32, i32
  }
  func.func @transform_4(%arg0: i32) -> (i32, i32) {
    %c0_i32 = arith.constant 0 : i32
    %c0_i32_0 = arith.constant 0 : i32
    %c0_i32_1 = arith.constant 0 : i32
    return %c0_i32, %c0_i32_0 : i32, i32
  }
  func.func @transform_5(%arg0: i32) -> (i32, i32) {
    %c0_i32 = arith.constant 0 : i32
    %c0_i32_0 = arith.constant 0 : i32
    %c0_i32_1 = arith.constant 0 : i32
    return %c0_i32, %c0_i32_0 : i32, i32
  }
  func.func @transform_6(%arg0: i32) -> (i32, i32) {
    %c0_i32 = arith.constant 0 : i32
    %c0_i32_0 = arith.constant 0 : i32
    %c0_i32_1 = arith.constant 0 : i32
    return %c0_i32, %c0_i32_0 : i32, i32
  }
  func.func @transform_7(%arg0: i32) -> (i32, i32) {
    %c0_i32 = arith.constant 0 : i32
    %c0_i32_0 = arith.constant 0 : i32
    %c0_i32_1 = arith.constant 0 : i32
    return %c0_i32, %c0_i32_0 : i32, i32
  }
  func.func @transform_8(%arg0: i32) -> (i32, i32, i32) {
    %c0_i32 = arith.constant 0 : i32
    %c0_i32_0 = arith.constant 0 : i32
    %c0_i32_1 = arith.constant 0 : i32
    return %arg0, %c0_i32, %c0_i32_0 : i32, i32, i32
  }
  func.func @transform_9(%arg0: i32) -> (i32, i32, i32) {
    %c0_i32 = arith.constant 0 : i32
    %c0_i32_0 = arith.constant 0 : i32
    %c0_i32_1 = arith.constant 0 : i32
    return %arg0, %c0_i32, %c0_i32_0 : i32, i32, i32
  }
}

</mosaic_0001>

<llo_original>
// kernel: general_attention.1
$region0: #{general_attention.1}
  #allocation0 [shape = 'u32[]', space=smem, size = 0x4, offset = 0x4, fixed_abs, tag = 'smem constant byte address 0x4 - core index']
  #allocation1 [shape = 'u32[144,128]{1,0:T(1,128)}', space=vmem, size = 0x12000, scoped, tag = 'internal scratch']
  %s0 = inlined_call_operand.vmem [shape: f32[2,8,32], index: 0, kind: input, shape index: {}]
  %s1 = inlined_call_operand.vmem [shape: f32[2,16,32], index: 1, kind: input, shape index: {}]
  %s2 = inlined_call_operand.vmem [shape: bf16[32,32], index: 2, kind: input, shape index: {}]
  %s3 = inlined_call_operand.vmem [shape: bf16[32,64], index: 3, kind: input, shape index: {}]
  %s4 = inlined_call_operand.vmem [shape: bf16[32,32], index: 4, kind: input, shape index: {}]
  %s5 = inlined_call_operand.vmem [shape: f32[1,32], index: 5, kind: input, shape index: {}]
  %s6 = inlined_call_operand.vmem [shape: f32[1,64], index: 6, kind: input, shape index: {}]
  %s7 = inlined_call_operand.vmem [shape: f32[1,32], index: 7, kind: input, shape index: {}]
  %s8 = inlined_call_operand.hbm [shape: f32[2,8,128], index: 8, kind: output, shape index: {0}]
  %s9 = inlined_call_operand.hbm [shape: f32[2,8,128], index: 9, kind: output, shape index: {1}]
  %10 = xla_tuple %s8, %s9
  %s11 = sld [smem:[#allocation0]]
  $region50: #{general_attention.1} parent=0
    _
  %s13 = ssub.s32 1, %s11
  %s14 = scalar_select 0, %s13, %s11
  $region1: #{general_attention.1} parent=0
    #allocation2 [shape = 'u8[8192]{0}', space=vmem, size = 0x2000, scoped, tag = 'output window, operand 0, single buffered']
    #allocation3 [shape = 's32[1]{0}', space=sflag, size = 0x4, scoped, tag = 'scoped memory for general_attention.1']
    #allocation4 [shape = 'u8[8192]{0}', space=vmem, size = 0x2000, scoped, tag = 'output window, operand 1, single buffered']
    #allocation5 [shape = 's32[1]{0}', space=sflag, size = 0x4, scoped, tag = 'scoped memory for general_attention.1']
    %15 = vsyncpa [#allocation3], 0
    %16 = vsyncpa [#allocation5], 0
    // Predicated region
    $region2: #{general_attention.1} parent=1 // pred_check
      _
    $region3: #{general_attention.1} parent=1 // pred_check_branch
      %18 = sbr.rel (0) target = $region5
    $region4: #{general_attention.1} parent=1 // pred_region
      _
    $region5: #{general_attention.1} parent=1 // pred_fallthru
      _
    // Predicated region
    $region6: #{general_attention.1} parent=1 // pred_check
      _
    $region7: #{general_attention.1} parent=1 // pred_check_branch
      %20 = sbr.rel (0) target = $region9
    $region8: #{general_attention.1} parent=1 // pred_region
      _
    $region9: #{general_attention.1} parent=1 // pred_fallthru
      _
    // Predicated region
    $region10: #{general_attention.1} parent=1 // pred_check
      _
    $region11: #{general_attention.1} parent=1 // pred_check_branch
      %22 = sbr.rel (0) target = $region13
    $region12: #{general_attention.1} parent=1 // pred_region
      _
    $region13: #{general_attention.1} parent=1 // pred_fallthru
      _
    // Predicated region
    $region14: #{general_attention.1} parent=1 // pred_check
      _
    $region15: #{general_attention.1} parent=1 // pred_check_branch
      %24 = sbr.rel (0) target = $region17
    $region16: #{general_attention.1} parent=1 // pred_region
      _
    $region17: #{general_attention.1} parent=1 // pred_fallthru
      _
    // Predicated region
    $region18: #{general_attention.1} parent=1 // pred_check
      _
    $region19: #{general_attention.1} parent=1 // pred_check_branch
      %26 = sbr.rel (0) target = $region21
    $region20: #{general_attention.1} parent=1 // pred_region
      _
    $region21: #{general_attention.1} parent=1 // pred_fallthru
      _
    // Predicated region
    $region22: #{general_attention.1} parent=1 // pred_check
      _
    $region23: #{general_attention.1} parent=1 // pred_check_branch
      %28 = sbr.rel (0) target = $region25
    $region24: #{general_attention.1} parent=1 // pred_region
      _
    $region25: #{general_attention.1} parent=1 // pred_fallthru
      _
    // Predicated region
    $region26: #{general_attention.1} parent=1 // pred_check
      _
    $region27: #{general_attention.1} parent=1 // pred_check_branch
      %30 = sbr.rel (0) target = $region29
    $region28: #{general_attention.1} parent=1 // pred_region
      _
    $region29: #{general_attention.1} parent=1 // pred_fallthru
      _
    // Predicated region
    $region30: #{general_attention.1} parent=1 // pred_check
      _
    $region31: #{general_attention.1} parent=1 // pred_check_branch
      %32 = sbr.rel (0) target = $region33
    $region32: #{general_attention.1} parent=1 // pred_region
      _
    $region33: #{general_attention.1} parent=1 // pred_fallthru
      _
    %v34 = vld [vmem:[%s0] sm:$0xff]
    %v35 = vld [vmem:[%s0 + $0x8] sm:$0xff]
    %v36 = vpack.c.bf16 %v35, %v34
    %v37 = vld [vmem:[%s1] sm:$0xff]
    %v38 = vld [vmem:[%s1 + $0x8] sm:$0xff]
    %v39 = vld [vmem:[%s1 + $0x10] sm:$0xff]
    %v40 = vld [vmem:[%s1 + $0x18] sm:$0xff]
    %v41 = vpack.c.bf16 %v38, %v37
    %v42 = vpack.c.bf16 %v40, %v39
    %v43 = vld [vmem:[%s2] sm:$0xf]
    %v44 = vld [vmem:[%s2 + $0x4] sm:$0xf]
    %v45 = vld [vmem:[%s2 + $0x8] sm:$0xf]
    %v46 = vld [vmem:[%s2 + $0xc] sm:$0xf]
    %v47 = vld [vmem:[%s5] sm:$0x1]
    %v49 = vlaneseq
    %v50 = vshrl.u32 %v49, 7
    %v51 = vsub.s32 0, %v50
    %v52 = vrot.slane %v47, %v51
    %v58 = vunpack.c.l.b16 %v43
    %v59 = vunpack.c.l.b16 %v44
    %v60 = vunpack.c.l.b16 %v45
    %v61 = vunpack.c.l.b16 %v46
    %v62 = vpack.c.b16 %v59, %v58
    %v63 = vpack.c.b16 %v61, %v60
    %vm66 = vcmask 261120
    %v68 = vsel %vm66, %v36, 0
    %70 = vmatprep.subr.bf16.mxu0 0
    %71 = vmatpush1.bf16.msra.mxu0 0
    %72 = vmatprep.subr.bf16.mxu0 0
    %73 = vmatpush1.bf16.msra.mxu0 0
    %74 = vmatprep.subr.bf16.mxu0 0
    %75 = vmatpush1.bf16.msra.mxu0 0
    %76 = vmatprep.subr.bf16.mxu0 0
    %77 = vmatpush1.bf16.msra.mxu0 0
    %78 = vmatprep.subr.bf16.mxu0 0
    %79 = vmatpush1.bf16.msra.mxu0 0
    %80 = vmatprep.subr.bf16.mxu0 0
    %81 = vmatpush1.bf16.msra.mxu0 0
    %82 = vmatprep.subr.bf16.mxu0 0
    %83 = vmatpush1.bf16.msra.mxu0 %v63
    %84 = vmatprep.subr.bf16.mxu0 0
    %85 = vmatpush1.bf16.msra.mxu0 %v62
    %86 = vmatprep.subr.bf16.mxu0 0
    %87 = vmatpush2.bf16.msra.mxu0 0
    %88 = vmatprep.subr.bf16.mxu0 0
    %89 = vmatpush2.bf16.msra.mxu0 0
    %90 = vmatprep.subr.bf16.mxu0 0
    %91 = vmatpush2.bf16.msra.mxu0 0
    %92 = vmatprep.subr.bf16.mxu0 0
    %93 = vmatpush2.bf16.msra.mxu0 0
    %94 = vmatprep.subr.bf16.mxu0 0
    %95 = vmatpush2.bf16.msra.mxu0 0
    %96 = vmatprep.subr.bf16.mxu0 0
    %97 = vmatpush2.bf16.msra.mxu0 0
    %98 = vmatprep.subr.bf16.mxu0 0
    %99 = vmatpush2.bf16.msra.mxu0 0
    %100 = vmatprep.subr.bf16.mxu0 0
    %101 = vmatpush2.bf16.msra.mxu0 0
    %102 = vmatprep.mubr.bf16.mxu0 0
    %103 = vmatmul.mubr.bf16.gmra.mxu0 %v68
    %v104 = vpop.f32.mrf.mxu0
    %v105 = vadd.f32 %v52, %v104
    %v106 = vpop.f32.mrf.mxu0
    %v107 = vpop.f32.mrf.mxu0
    %v108 = vadd.f32 %v52, %v107
    %v109 = vpop.f32.mrf.mxu0
    %110 = vdwg.mxu0
    %v111 = vld [vmem:[%s3] sm:$0xf]
    %v112 = vld [vmem:[%s3 + $0x4] sm:$0xf]
    %v113 = vld [vmem:[%s3 + $0x8] sm:$0xf]
    %v114 = vld [vmem:[%s3 + $0xc] sm:$0xf]
    %v115 = vld [vmem:[%s6] sm:$0x1]
    %v117 = vlaneseq
    %v118 = vshrl.u32 %v117, 7
    %v119 = vsub.s32 0, %v118
    %v120 = vrot.slane %v115, %v119
    %v126 = vunpack.c.l.b16 %v111
    %v127 = vunpack.c.l.b16 %v112
    %v128 = vunpack.c.l.b16 %v113
    %v129 = vunpack.c.l.b16 %v114
    %v130 = vpack.c.b16 %v127, %v126
    %v131 = vpack.c.b16 %v129, %v128
    %v135 = vsel %vm66, %v41, 0
    %v138 = vsel %vm66, %v42, 0
    %140 = vmatprep.subr.bf16.mxu0 0
    %141 = vmatpush1.bf16.msra.mxu0 0
    %142 = vmatprep.subr.bf16.mxu0 0
    %143 = vmatpush1.bf16.msra.mxu0 0
    %144 = vmatprep.subr.bf16.mxu0 0
    %145 = vmatpush1.bf16.msra.mxu0 0
    %146 = vmatprep.subr.bf16.mxu0 0
    %147 = vmatpush1.bf16.msra.mxu0 0
    %148 = vmatprep.subr.bf16.mxu0 0
    %149 = vmatpush1.bf16.msra.mxu0 0
    %150 = vmatprep.subr.bf16.mxu0 0
    %151 = vmatpush1.bf16.msra.mxu0 0
    %152 = vmatprep.subr.bf16.mxu0 0
    %153 = vmatpush1.bf16.msra.mxu0 %v131
    %154 = vmatprep.subr.bf16.mxu0 0
    %155 = vmatpush1.bf16.msra.mxu0 %v130
    %156 = vmatprep.subr.bf16.mxu0 0
    %157 = vmatpush2.bf16.msra.mxu0 0
    %158 = vmatprep.subr.bf16.mxu0 0
    %159 = vmatpush2.bf16.msra.mxu0 0
    %160 = vmatprep.subr.bf16.mxu0 0
    %161 = vmatpush2.bf16.msra.mxu0 0
    %162 = vmatprep.subr.bf16.mxu0 0
    %163 = vmatpush2.bf16.msra.mxu0 0
    %164 = vmatprep.subr.bf16.mxu0 0
    %165 = vmatpush2.bf16.msra.mxu0 0
    %166 = vmatprep.subr.bf16.mxu0 0
    %167 = vmatpush2.bf16.msra.mxu0 0
    %168 = vmatprep.subr.bf16.mxu0 0
    %169 = vmatpush2.bf16.msra.mxu0 0
    %170 = vmatprep.subr.bf16.mxu0 0
    %171 = vmatpush2.bf16.msra.mxu0 0
    %172 = vmatprep.mubr.bf16.mxu0 0
    %173 = vmatmul.mubr.bf16.gmra.mxu0 %v135
    %v174 = vpop.f32.mrf.mxu0
    %v175 = vadd.f32 %v120, %v174
    %v176 = vpop.f32.mrf.mxu0
    %v177 = vpop.f32.mrf.mxu0
    %v178 = vadd.f32 %v120, %v177
    %v179 = vpop.f32.mrf.mxu0
    %180 = vmatprep.mubr.bf16.mxu0 0
    %181 = vmatmul.mubr.bf16.gmra.mxu0 %v138
    %v182 = vpop.f32.mrf.mxu0
    %v183 = vadd.f32 %v120, %v182
    %v184 = vpop.f32.mrf.mxu0
    %v185 = vpop.f32.mrf.mxu0
    %v186 = vadd.f32 %v120, %v185
    %v187 = vpop.f32.mrf.mxu0
    %188 = vdwg.mxu0
    %v189 = vpack.c.bf16 %v108, %v105
    %v191 = vunpack.c.l.b16 %v189
    %v192 = vunpack.c.h.b16 %v189
    %v193 = vpack.c.b16 %v191, %v191
    %v194 = vpack.c.b16 %v192, %v192
    %v195 = vpack.c.bf16 %v178, %v175
    %v196 = vpack.c.bf16 %v186, %v183
    %v198 = vsel %vm66, %v193, 0
    %v201 = vsel %vm66, %v195, 0
    %203 = vmatprep.subr.bf16.mxu0 0
    %204 = vmatpush1.bf16.xpose.msra.mxu0 0
    %205 = vmatprep.subr.bf16.mxu0 0
    %206 = vmatpush1.bf16.xpose.msra.mxu0 0
    %207 = vmatprep.subr.bf16.mxu0 0
    %208 = vmatpush1.bf16.xpose.msra.mxu0 0
    %209 = vmatprep.subr.bf16.mxu0 0
    %210 = vmatpush1.bf16.xpose.msra.mxu0 0
    %211 = vmatprep.subr.bf16.mxu0 0
    %212 = vmatpush1.bf16.xpose.msra.mxu0 0
    %213 = vmatprep.subr.bf16.mxu0 0
    %214 = vmatpush1.bf16.xpose.msra.mxu0 0
    %215 = vmatprep.subr.bf16.mxu0 0
    %216 = vmatpush1.bf16.xpose.msra.mxu0 0
    %217 = vmatprep.subr.bf16.mxu0 0
    %218 = vmatpush1.bf16.xpose.msra.mxu0 %v201
    %219 = vmatprep.subr.bf16.mxu0 0
    %220 = vmatpush2.bf16.xpose.msra.mxu0 0
    %221 = vmatprep.subr.bf16.mxu0 0
    %222 = vmatpush2.bf16.xpose.msra.mxu0 0
    %223 = vmatprep.subr.bf16.mxu0 0
    %224 = vmatpush2.bf16.xpose.msra.mxu0 0
    %225 = vmatprep.subr.bf16.mxu0 0
    %226 = vmatpush2.bf16.xpose.msra.mxu0 0
    %227 = vmatprep.subr.bf16.mxu0 0
    %228 = vmatpush2.bf16.xpose.msra.mxu0 0
    %229 = vmatprep.subr.bf16.mxu0 0
    %230 = vmatpush2.bf16.xpose.msra.mxu0 0
    %231 = vmatprep.subr.bf16.mxu0 0
    %232 = vmatpush2.bf16.xpose.msra.mxu0 0
    %233 = vmatprep.subr.bf16.mxu0 0
    %234 = vmatpush2.bf16.xpose.msra.mxu0 0
    %235 = vmatprep.mubr.bf16.mxu0 0
    %236 = vmatmul.mubr.bf16.gmra.mxu0 %v198
    %v237 = vpop.f32.mrf.mxu0
    %v238 = vadd.f32 0.0, %v237
    %v239 = vpop.f32.mrf.mxu0
    %v240 = vpop.f32.mrf.mxu0
    %v241 = vpop.f32.mrf.mxu0
    %242 = vdwg.mxu0
    %v244 = vsel %vm66, %v194, 0
    %v247 = vsel %vm66, %v196, 0
    %249 = vmatprep.subr.bf16.mxu0 0
    %250 = vmatpush1.bf16.xpose.msra.mxu0 0
    %251 = vmatprep.subr.bf16.mxu0 0
    %252 = vmatpush1.bf16.xpose.msra.mxu0 0
    %253 = vmatprep.subr.bf16.mxu0 0
    %254 = vmatpush1.bf16.xpose.msra.mxu0 0
    %255 = vmatprep.subr.bf16.mxu0 0
    %256 = vmatpush1.bf16.xpose.msra.mxu0 0
    %257 = vmatprep.subr.bf16.mxu0 0
    %258 = vmatpush1.bf16.xpose.msra.mxu0 0
    %259 = vmatprep.subr.bf16.mxu0 0
    %260 = vmatpush1.bf16.xpose.msra.mxu0 0
    %261 = vmatprep.subr.bf16.mxu0 0
    %262 = vmatpush1.bf16.xpose.msra.mxu0 0
    %263 = vmatprep.subr.bf16.mxu0 0
    %264 = vmatpush1.bf16.xpose.msra.mxu0 %v247
    %265 = vmatprep.subr.bf16.mxu0 0
    %266 = vmatpush2.bf16.xpose.msra.mxu0 0
    %267 = vmatprep.subr.bf16.mxu0 0
    %268 = vmatpush2.bf16.xpose.msra.mxu0 0
    %269 = vmatprep.subr.bf16.mxu0 0
    %270 = vmatpush2.bf16.xpose.msra.mxu0 0
    %271 = vmatprep.subr.bf16.mxu0 0
    %272 = vmatpush2.bf16.xpose.msra.mxu0 0
    %273 = vmatprep.subr.bf16.mxu0 0
    %274 = vmatpush2.bf16.xpose.msra.mxu0 0
    %275 = vmatprep.subr.bf16.mxu0 0
    %276 = vmatpush2.bf16.xpose.msra.mxu0 0
    %277 = vmatprep.subr.bf16.mxu0 0
    %278 = vmatpush2.bf16.xpose.msra.mxu0 0
    %279 = vmatprep.subr.bf16.mxu0 0
    %280 = vmatpush2.bf16.xpose.msra.mxu0 0
    %281 = vmatprep.mubr.bf16.mxu0 0
    %282 = vmatmul.mubr.bf16.gmra.mxu0 %v244
    %v283 = vpop.f32.mrf.mxu0
    %v284 = vadd.f32 0.0, %v283
    %v285 = vpop.f32.mrf.mxu0
    %v286 = vpop.f32.mrf.mxu0
    %v287 = vpop.f32.mrf.mxu0
    %288 = vdwg.mxu0
    %vm289 = vcmask 130048
    %v290 = vsel %vm289, %v238, -inf
    %291 = vmax.xlane.f32.xlu0 %v290
    %v292 = vpop.xlane.xlu0 %291
    %v293 = vsel %vm289, %v284, -inf
    %294 = vmax.xlane.f32.xlu0 %v293
    %v295 = vpop.xlane.xlu0 %294
    %v296 = vsub.f32 %v238, %v292
    %v297 = vsub.f32 %v284, %v295
    %v298 = vmul.f32 %v296, 1.442695
    %v299 = vpow.pop %v298
    %v300 = vmul.f32 %v297, 1.442695
    %v301 = vpow.pop %v300
    %v302 = vsel %vm289, %v299, 0.0
    %303 = vadd.xlane.f32.xlu0 %v302
    %v304 = vpop.xlane.xlu0 %303
    %v305 = vsel %vm289, %v301, 0.0
    %306 = vadd.xlane.f32.xlu0 %v305
    %v307 = vpop.xlane.xlu0 %306
    %v308 = vrcp.pop %v304
    %v309 = vrcp.pop %v307
    %v310 = vmul.f32 %v299, %v308
    %v311 = vmul.f32 %v301, %v309
    %v312 = vpack.c.bf16 %v310, %v310
    %v313 = vpack.c.bf16 %v311, %v311
    %315 = vrot.lane.b32.xlu0 %v195, 96
    %v316 = vpop.permute.xlu0 %315
    %v319 = vsel %vm289, %v312, 0
    %321 = vmatprep.subr.bf16.mxu0 0
    %322 = vmatpush1.bf16.msra.mxu0 0
    %323 = vmatprep.subr.bf16.mxu0 0
    %324 = vmatpush1.bf16.msra.mxu0 0
    %325 = vmatprep.subr.bf16.mxu0 0
    %326 = vmatpush1.bf16.msra.mxu0 0
    %327 = vmatprep.subr.bf16.mxu0 0
    %328 = vmatpush1.bf16.msra.mxu0 0
    %329 = vmatprep.subr.bf16.mxu0 0
    %330 = vmatpush1.bf16.msra.mxu0 0
    %331 = vmatprep.subr.bf16.mxu0 0
    %332 = vmatpush1.bf16.msra.mxu0 0
    %333 = vmatprep.subr.bf16.mxu0 0
    %334 = vmatpush1.bf16.msra.mxu0 0
    %335 = vmatprep.subr.bf16.mxu0 0
    %336 = vmatpush1.bf16.msra.mxu0 %v316
    %337 = vmatprep.subr.bf16.mxu0 0
    %338 = vmatpush2.bf16.msra.mxu0 0
    %339 = vmatprep.subr.bf16.mxu0 0
    %340 = vmatpush2.bf16.msra.mxu0 0
    %341 = vmatprep.subr.bf16.mxu0 0
    %342 = vmatpush2.bf16.msra.mxu0 0
    %343 = vmatprep.subr.bf16.mxu0 0
    %344 = vmatpush2.bf16.msra.mxu0 0
    %345 = vmatprep.subr.bf16.mxu0 0
    %346 = vmatpush2.bf16.msra.mxu0 0
    %347 = vmatprep.subr.bf16.mxu0 0
    %348 = vmatpush2.bf16.msra.mxu0 0
    %349 = vmatprep.subr.bf16.mxu0 0
    %350 = vmatpush2.bf16.msra.mxu0 0
    %351 = vmatprep.subr.bf16.mxu0 0
    %352 = vmatpush2.bf16.msra.mxu0 0
    %353 = vmatprep.mubr.bf16.mxu0 0
    %354 = vmatmul.mubr.bf16.gmra.mxu0 %v319
    %v355 = vpop.f32.mrf.mxu0
    %v356 = vadd.f32 0.0, %v355
    %v357 = vpop.f32.mrf.mxu0
    %v358 = vpop.f32.mrf.mxu0
    %v359 = vpop.f32.mrf.mxu0
    %360 = vdwg.mxu0
    %362 = vrot.lane.b32.xlu0 %v196, 96
    %v363 = vpop.permute.xlu0 %362
    %v366 = vsel %vm289, %v313, 0
    %368 = vmatprep.subr.bf16.mxu0 0
    %369 = vmatpush1.bf16.msra.mxu0 0
    %370 = vmatprep.subr.bf16.mxu0 0
    %371 = vmatpush1.bf16.msra.mxu0 0
    %372 = vmatprep.subr.bf16.mxu0 0
    %373 = vmatpush1.bf16.msra.mxu0 0
    %374 = vmatprep.subr.bf16.mxu0 0
    %375 = vmatpush1.bf16.msra.mxu0 0
    %376 = vmatprep.subr.bf16.mxu0 0
    %377 = vmatpush1.bf16.msra.mxu0 0
    %378 = vmatprep.subr.bf16.mxu0 0
    %379 = vmatpush1.bf16.msra.mxu0 0
    %380 = vmatprep.subr.bf16.mxu0 0
    %381 = vmatpush1.bf16.msra.mxu0 0
    %382 = vmatprep.subr.bf16.mxu0 0
    %383 = vmatpush1.bf16.msra.mxu0 %v363
    %384 = vmatprep.subr.bf16.mxu0 0
    %385 = vmatpush2.bf16.msra.mxu0 0
    %386 = vmatprep.subr.bf16.mxu0 0
    %387 = vmatpush2.bf16.msra.mxu0 0
    %388 = vmatprep.subr.bf16.mxu0 0
    %389 = vmatpush2.bf16.msra.mxu0 0
    %390 = vmatprep.subr.bf16.mxu0 0
    %391 = vmatpush2.bf16.msra.mxu0 0
    %392 = vmatprep.subr.bf16.mxu0 0
    %393 = vmatpush2.bf16.msra.mxu0 0
    %394 = vmatprep.subr.bf16.mxu0 0
    %395 = vmatpush2.bf16.msra.mxu0 0
    %396 = vmatprep.subr.bf16.mxu0 0
    %397 = vmatpush2.bf16.msra.mxu0 0
    %398 = vmatprep.subr.bf16.mxu0 0
    %399 = vmatpush2.bf16.msra.mxu0 0
    %400 = vmatprep.mubr.bf16.mxu0 0
    %401 = vmatmul.mubr.bf16.gmra.mxu0 %v366
    %v402 = vpop.f32.mrf.mxu0
    %v403 = vadd.f32 0.0, %v402
    %v404 = vpop.f32.mrf.mxu0
    %v405 = vpop.f32.mrf.mxu0
    %v406 = vpop.f32.mrf.mxu0
    %407 = vdwg.mxu0
    %v408 = vpack.c.bf16 %v403, %v356
    %v409 = vld [vmem:[%s4] sm:$0xf]
    %v410 = vld [vmem:[%s4 + $0x4] sm:$0xf]
    %v411 = vld [vmem:[%s4 + $0x8] sm:$0xf]
    %v412 = vld [vmem:[%s4 + $0xc] sm:$0xf]
    %v413 = vld [vmem:[%s7] sm:$0x1]
    %v415 = vlaneseq
    %v416 = vshrl.u32 %v415, 7
    %v417 = vsub.s32 0, %v416
    %v418 = vrot.slane %v413, %v417
    %v424 = vunpack.c.l.b16 %v409
    %v425 = vunpack.c.l.b16 %v410
    %v426 = vunpack.c.l.b16 %v411
    %v427 = vunpack.c.l.b16 %v412
    %v428 = vpack.c.b16 %v425, %v424
    %v429 = vpack.c.b16 %v427, %v426
    %v433 = vsel %vm66, %v408, 0
    %435 = vmatprep.subr.bf16.mxu0 0
    %436 = vmatpush1.bf16.msra.mxu0 0
    %437 = vmatprep.subr.bf16.mxu0 0
    %438 = vmatpush1.bf16.msra.mxu0 0
    %439 = vmatprep.subr.bf16.mxu0 0
    %440 = vmatpush1.bf16.msra.mxu0 0
    %441 = vmatprep.subr.bf16.mxu0 0
    %442 = vmatpush1.bf16.msra.mxu0 0
    %443 = vmatprep.subr.bf16.mxu0 0
    %444 = vmatpush1.bf16.msra.mxu0 0
    %445 = vmatprep.subr.bf16.mxu0 0
    %446 = vmatpush1.bf16.msra.mxu0 0
    %447 = vmatprep.subr.bf16.mxu0 0
    %448 = vmatpush1.bf16.msra.mxu0 %v429
    %449 = vmatprep.subr.bf16.mxu0 0
    %450 = vmatpush1.bf16.msra.mxu0 %v428
    %451 = vmatprep.subr.bf16.mxu0 0
    %452 = vmatpush2.bf16.msra.mxu0 0
    %453 = vmatprep.subr.bf16.mxu0 0
    %454 = vmatpush2.bf16.msra.mxu0 0
    %455 = vmatprep.subr.bf16.mxu0 0
    %456 = vmatpush2.bf16.msra.mxu0 0
    %457 = vmatprep.subr.bf16.mxu0 0
    %458 = vmatpush2.bf16.msra.mxu0 0
    %459 = vmatprep.subr.bf16.mxu0 0
    %460 = vmatpush2.bf16.msra.mxu0 0
    %461 = vmatprep.subr.bf16.mxu0 0
    %462 = vmatpush2.bf16.msra.mxu0 0
    %463 = vmatprep.subr.bf16.mxu0 0
    %464 = vmatpush2.bf16.msra.mxu0 0
    %465 = vmatprep.subr.bf16.mxu0 0
    %466 = vmatpush2.bf16.msra.mxu0 0
    %467 = vmatprep.mubr.bf16.mxu0 0
    %468 = vmatmul.mubr.bf16.gmra.mxu0 %v433
    %v469 = vpop.f32.mrf.mxu0
    %v470 = vadd.f32 %v418, %v469
    %v471 = vpop.f32.mrf.mxu0
    %v472 = vpop.f32.mrf.mxu0
    %v473 = vadd.f32 %v418, %v472
    %v474 = vpop.f32.mrf.mxu0
    %475 = vdwg.mxu0
    %v476 = vsel %vm66, %v470, 0.0
    %v477 = vsel %vm66, %v473, 0.0
    %478 = vst [vmem:[#allocation2] sm:$0xff] %v476
    %479 = vst [vmem:[#allocation2 + $0x8] sm:$0xff] %v477
    %v480 = vsel %vm289, %v310, 0.0
    %v481 = vsel %vm289, %v311, 0.0
    %482 = vst [vmem:[#allocation4] sm:$0xff] %v480
    %483 = vst [vmem:[#allocation4 + $0x8] sm:$0xff] %v481
    // Predicated region
    $region34: #{general_attention.1} parent=1 // pred_check
      _
    $region35: #{general_attention.1} parent=1 // pred_check_branch
      %485 = sbr.rel (0) target = $region37
    $region36: #{general_attention.1} parent=1 // pred_region
      %s487 = ssub.s32 256, 256
      %488 = vsyncadd [#allocation3], %s487
      %s489 = sshll.u32 [#allocation2], 4
      %s490 = int_to_ptr.vmem [resolvable:$true] %s489
      %495 = dma.vmem_to_hbm [thread:$0]  %s490, 256, %s8, [#allocation3], 128, 128, 8
    $region37: #{general_attention.1} parent=1 // pred_fallthru
      _
    // Predicated region
    $region38: #{general_attention.1} parent=1 // pred_check
      _
    $region39: #{general_attention.1} parent=1 // pred_check_branch
      %497 = sbr.rel (0) target = $region41
    $region40: #{general_attention.1} parent=1 // pred_region
      %s499 = ssub.s32 256, 256
      %500 = vsyncadd [#allocation5], %s499
      %s501 = sshll.u32 [#allocation4], 4
      %s502 = int_to_ptr.vmem [resolvable:$true] %s501
      %507 = dma.vmem_to_hbm [thread:$0]  %s502, 256, %s9, [#allocation5], 128, 128, 8
    $region41: #{general_attention.1} parent=1 // pred_fallthru
      _
    // Predicated region
    $region42: #{general_attention.1} parent=1 // pred_check
      _
    $region43: #{general_attention.1} parent=1 // pred_check_branch
      %509 = sbr.rel (0) target = $region45
    $region44: #{general_attention.1} parent=1 // pred_region
      %510 = dma.done [#allocation3], 256
    $region45: #{general_attention.1} parent=1 // pred_fallthru
      _
    // Predicated region
    $region46: #{general_attention.1} parent=1 // pred_check
      _
    $region47: #{general_attention.1} parent=1 // pred_check_branch
      %512 = sbr.rel (0) target = $region49
    $region48: #{general_attention.1} parent=1 // pred_region
      %513 = dma.done [#allocation5], 256
    $region49: #{general_attention.1} parent=1 // pred_fallthru
      _
    %514 = vsyncpa [#allocation3], 1
    %515 = vsyncpa [#allocation5], 1

</llo_original>
